<compile_context>
chip_gen: v7x
topology: tpu7x:2x2x1
jax: 0.10.0
libtpu: 0.0.40
codegen_flags: <defaults>
</compile_context>

<pallas_src>
import numpy as np
import jax
import jax.numpy as jnp
from jax.experimental import pallas as pl
from jax.experimental.pallas import tpu as pltpu


def _round_up(n, m):
    return ((n + m - 1) // m) * m


def make_policy_kernel(s_dim, a_dim, h0p, h1p, h2p, aout_p):
    """Fused MLP trunk + bound-guided clamp for one (TB, D) batch tile."""

    def policy_kernel(x_ref, w0_ref, w1_ref, w2_ref, w3_ref, p_ref, c_ref, out_ref):
        x = x_ref[...]                                        # (TB, D) f32
        xb = x.astype(jnp.bfloat16)                           # MXU operand / hi part
        x_lo = (x - xb.astype(jnp.float32)).astype(jnp.bfloat16)  # residual (exact widen)

        # packed constants tile: rows 0..3 = biases, rows 4..6 = folded bounds
        b0 = c_ref[0:1, :h0p]
        b1 = c_ref[1:2, :h1p]
        b2 = c_ref[2:3, :h2p]
        b3 = c_ref[3:4, :aout_p]
        lo = c_ref[4:5, :aout_p]      # state_min / action_scale   (0 in pad cols)
        hi = c_ref[5:6, :aout_p]      # state_max / action_scale   (0 in pad cols)
        sc = c_ref[6:7, :aout_p]      # state_scale / action_scale (0 in pad cols)

        # MLP trunk: bf16 inputs on the MXU, f32 accumulation, f32 epilogues.
        h = jnp.dot(xb, w0_ref[...], preferred_element_type=jnp.float32) + b0
        h = jnp.maximum(h, 0.0).astype(jnp.bfloat16)
        h = jnp.dot(h, w1_ref[...], preferred_element_type=jnp.float32) + b1
        h = jnp.maximum(h, 0.0).astype(jnp.bfloat16)
        h = jnp.dot(h, w2_ref[...], preferred_element_type=jnp.float32) + b2
        h = jnp.tanh(h).astype(jnp.bfloat16)
        y = jnp.dot(h, w3_ref[...], preferred_element_type=jnp.float32) + b3  # (TB, aout_p)

        # Exact lane-widening of x[:, :s_dim] to aout_p lanes via a 0/1 selection
        # matmul: products with 0/1 entries are exact, hi+residual restores full
        # f32 precision of x for the clamp arithmetic.
        pmat = p_ref[...]
        x_wide = (jnp.dot(xb, pmat, preferred_element_type=jnp.float32)
                  + jnp.dot(x_lo, pmat, preferred_element_type=jnp.float32))

        scaled = x_wide * sc
        ds = lo - scaled
        ds1 = hi - scaled
        # clamp(y-ds, min=0)+ds ; clamp(.-ds1, max=0)+ds1  ==  min(max(y, ds), ds1)
        out_ref[...] = jnp.minimum(jnp.maximum(y, ds), ds1).astype(out_ref.dtype)

    return policy_kernel


def prepare_policy_params(params, bounds, s_dim):
    """One-time preprocessing (do NOT run per forward call): pad weights to
    128-lane widths (bf16, zero-padded -> identical math), pack the 4 biases +
    3 folded bound rows into a single (8, cw) f32 tile, and build the 0/1
    selection matrix used to lane-widen x inside the kernel."""
    (w0, b0), (w1, b1), (w2, b2), (w3, b3) = params
    smin, smax, ssf, asf = bounds

    D = int(w0.shape[0])
    h0, h1, h2 = int(w0.shape[1]), int(w1.shape[1]), int(w2.shape[1])
    a_dim = int(w3.shape[1])
    assert a_dim == s_dim, "clamp broadcast requires a_dim == s_dim (reference usage)"
    # sanity guards for the folded constants / clamp rewrite
    assert np.all(np.asarray(smin) <= np.asarray(smax)), "state_min must be <= state_max"
    assert np.all(np.asarray(asf) > 0.0), "action scaling factors must be positive"

    h0p, h1p, h2p = (_round_up(h, 128) for h in (h0, h1, h2))
    aout_p = _round_up(a_dim, 128)            # lane-dense padded output width

    bf16 = jnp.bfloat16
    w0p = jnp.zeros((D, h0p), bf16).at[:, :h0].set(w0.astype(bf16))
    w1p = jnp.zeros((h0p, h1p), bf16).at[:h0, :h1].set(w1.astype(bf16))
    w2p = jnp.zeros((h1p, h2p), bf16).at[:h1, :h2].set(w2.astype(bf16))
    w3p = jnp.zeros((h2p, aout_p), bf16).at[:h2, :a_dim].set(w3.astype(bf16))

    # 0/1 selection matrix: routes x[:, j] -> lane j (j < s_dim) of the output width.
    idx = jnp.arange(s_dim)
    pmat = jnp.zeros((D, aout_p), bf16).at[idx, idx].set(1.0)

    cw = _round_up(max(h0p, h1p, h2p, aout_p), 128)
    consts = jnp.zeros((8, cw), jnp.float32)
    consts = consts.at[0, :h0].set(b0.reshape(-1))
    consts = consts.at[1, :h1].set(b1.reshape(-1))
    consts = consts.at[2, :h2].set(b2.reshape(-1))
    consts = consts.at[3, :a_dim].set(b3.reshape(-1))
    consts = consts.at[4, :a_dim].set((smin / asf).reshape(-1))
    consts = consts.at[5, :a_dim].set((smax / asf).reshape(-1))
    consts = consts.at[6, :s_dim].set((ssf / asf).reshape(-1))

    return (w0p, w1p, w2p, w3p, pmat, consts)


def policy_net_forward(x, packed, *, s_dim, block_b=2048):
    """x: (B, s_dim + 2*g_dim) float32 -> (B, a_dim) float32.
    `packed` is the output of prepare_policy_params (one-time)."""
    w0p, w1p, w2p, w3p, pmat, consts = packed
    B, D = x.shape
    a_dim = s_dim
    h0p, h1p, h2p = w0p.shape[1], w1p.shape[1], w2p.shape[1]
    aout_p = w3p.shape[1]
    assert w0p.shape[0] == D, "input feature dim mismatch with prepared weights"

    # Batch tile: as large as block_b allows, but keep >= 2 grid steps when B
    # permits so the "parallel" axis can shard across both TensorCores on v7x.
    if B < 16:
        TB = B                                        # single full-dim block (legal)
    else:
        two_step_cap = _round_up(pl.cdiv(B, 2), 8)    # always < B for B >= 16
        TB = max(8, min(_round_up(block_b, 8), two_step_cap))
    grid = (pl.cdiv(B, TB),)   # ragged last tile handled by Pallas OOB masking: no x copy

    kernel = make_policy_kernel(s_dim, a_dim, h0p, h1p, h2p, aout_p)

    def resident(arr):   # weights / constants: same block every step -> stay VMEM-resident
        return pl.BlockSpec(arr.shape, lambda i: (0, 0))

    out = pl.pallas_call(
        kernel,
        out_shape=jax.ShapeDtypeStruct((B, aout_p), jnp.float32),
        grid=grid,
        in_specs=[
            pl.BlockSpec((TB, D), lambda i: (i, 0)),          # x streams through VMEM
            resident(w0p), resident(w1p), resident(w2p), resident(w3p),
            resident(pmat), resident(consts),
        ],
        out_specs=pl.BlockSpec((TB, aout_p), lambda i: (i, 0)),   # lane-dense output
        compiler_params=pltpu.CompilerParams(
            dimension_semantics=("parallel",)),
    )(x, w0p, w1p, w2p, w3p, pmat, consts)

    return out[:, :a_dim]


def init_params(key, s_dim, g_dim, a_dim):
    """Deterministic init mimicking nn.Linear default (U[-1/sqrt(fan_in), ...])."""
    d = s_dim + 2 * g_dim
    num_units = [d, d * 3, d * 6, d * 3, a_dim]
    params = []
    for i in range(1, len(num_units)):
        fan_in, fan_out = num_units[i - 1], num_units[i]
        key, kw, kb = jax.random.split(key, 3)
        bound = 1.0 / np.sqrt(fan_in)
        # stored transposed: (in, out)
        w = jax.random.uniform(kw, (fan_in, fan_out), jnp.float32, -bound, bound)
        b = jax.random.uniform(kb, (1, fan_out), jnp.float32, -bound, bound)
        params.append((w, b))
    return params


def init_bounds(s_dim, a_dim):
    # deterministic synthetic s_bound / a_bound
    s_bound = [(-1.0 - 0.1 * i, 1.0 + 0.05 * i) for i in range(s_dim)]
    a_bound = [(-0.5 - 0.05 * i, 0.5 + 0.1 * i) for i in range(a_dim)]

    largest_state = np.array([max(abs(lo), abs(hi)) for lo, hi in s_bound], np.float32)
    state_min = np.array([lo for lo, _ in s_bound], np.float32).reshape(1, -1)
    state_max = np.array([hi for _, hi in s_bound], np.float32).reshape(1, -1)
    largest_action = np.array([max(abs(lo), abs(hi)) for lo, hi in a_bound], np.float32)

    smin = jnp.asarray(state_min)                               # (1, s_dim)
    smax = jnp.asarray(state_max)                               # (1, s_dim)
    ssf = jnp.asarray(largest_state.reshape(1, -1))             # (1, s_dim)
    asf = jnp.asarray(largest_action.reshape(1, -1))            # (1, a_dim)
    return smin, smax, ssf, asf


def reference_forward(x, params, bounds, s_dim):
    """Pure-JAX reference at matching precision (bf16 matmul inputs, f32 accum),
    using the original PyTorch epilogue formulation."""
    (w0, b0), (w1, b1), (w2, b2), (w3, b3) = params
    smin, smax, ssf, asf = bounds
    bf16 = jnp.bfloat16

    def mm(a, w):
        return jnp.dot(a.astype(bf16), w.astype(bf16),
                       preferred_element_type=jnp.float32)

    h = jnp.maximum(mm(x, w0) + b0, 0.0)
    h = jnp.maximum(mm(h, w1) + b1, 0.0)
    h = jnp.tanh(mm(h, w2) + b2)
    y = mm(h, w3) + b3
    scaled = x[:, :s_dim] * ssf
    ds = (smin - scaled) / asf
    y = jnp.maximum(y - ds, 0.0) + ds
    ds1 = (smax - scaled) / asf
    y = jnp.minimum(y - ds1, 0.0) + ds1
    return y


if __name__ == "__main__":
    # small shapes consistent with the module: a_dim must equal s_dim for the
    # clamp arithmetic to broadcast (as in the reference usage).
    s_dim, g_dim, a_dim = 8, 4, 8
    D = s_dim + 2 * g_dim   # 16

    key = jax.random.PRNGKey(0)
    key, kx, kx2 = jax.random.split(key, 3)

    params = init_params(jax.random.PRNGKey(0), s_dim, g_dim, a_dim)
    bounds = init_bounds(s_dim, a_dim)

    # one-time preprocessing (weight padding + constants packing hoisted out of
    # the per-call path)
    packed = prepare_policy_params(params, bounds, s_dim)
    fwd = jax.jit(policy_net_forward, static_argnames=("s_dim", "block_b"))

    # small-batch path (single full-dim block)
    x = jax.random.normal(kx, (2, D), jnp.float32)
    out = jax.block_until_ready(fwd(x, packed, s_dim=s_dim))
    ref = jax.block_until_ready(reference_forward(x, params, bounds, s_dim))
    np.testing.assert_allclose(np.asarray(out), np.asarray(ref), rtol=1e-3, atol=1e-3)

    # multi-step grid with a ragged last tile (no wrapper-side x padding copy)
    x_big = jax.random.normal(kx2, (700, D), jnp.float32)
    out_big = jax.block_until_ready(fwd(x_big, packed, s_dim=s_dim))
    ref_big = jax.block_until_ready(reference_forward(x_big, params, bounds, s_dim))
    np.testing.assert_allclose(np.asarray(out_big), np.asarray(ref_big),
                               rtol=1e-3, atol=1e-3)

    print("KERNEL_OK")
</pallas_src>

<mosaic_0001>
module attributes {stable_mosaic.version = 11 : i64} {
  func.func @policy_kernel(%arg0: i32, %arg1: memref<2x16xf32, #tpu.memory_space<vmem>>, %arg2: memref<16x128xbf16, #tpu.memory_space<vmem>>, %arg3: memref<128x128xbf16, #tpu.memory_space<vmem>>, %arg4: memref<128x128xbf16, #tpu.memory_space<vmem>>, %arg5: memref<128x128xbf16, #tpu.memory_space<vmem>>, %arg6: memref<16x128xbf16, #tpu.memory_space<vmem>>, %arg7: memref<8x128xf32, #tpu.memory_space<vmem>>, %arg8: memref<2x128xf32, #tpu.memory_space<vmem>>) attributes {dimension_semantics = [#tpu.dimension_semantics<parallel>], iteration_bounds = array<i64: 1>, scalar_prefetch = 0 : i64, scratch_operands = 0 : i64, tpu.core_type = #tpu.core_type<tc>, window_params = [{transform_indices = @transform_0, window_bounds = array<i64: 2, 16>}, {pipeline_mode = #tpu.pipeline_mode<synchronous>, transform_indices = @transform_1, window_bounds = array<i64: 16, 128>}, {pipeline_mode = #tpu.pipeline_mode<synchronous>, transform_indices = @transform_2, window_bounds = array<i64: 128, 128>}, {pipeline_mode = #tpu.pipeline_mode<synchronous>, transform_indices = @transform_3, window_bounds = array<i64: 128, 128>}, {pipeline_mode = #tpu.pipeline_mode<synchronous>, transform_indices = @transform_4, window_bounds = array<i64: 128, 128>}, {pipeline_mode = #tpu.pipeline_mode<synchronous>, transform_indices = @transform_5, window_bounds = array<i64: 16, 128>}, {pipeline_mode = #tpu.pipeline_mode<synchronous>, transform_indices = @transform_6, window_bounds = array<i64: 8, 128>}, {transform_indices = @transform_7, window_bounds = array<i64: 2, 128>}]} {
    %c0 = arith.constant 0 : index
    %c0_0 = arith.constant 0 : index
    %0 = vector.load %arg1[%c0, %c0_0] : memref<2x16xf32, #tpu.memory_space<vmem>>, vector<2x16xf32>
    %1 = arith.truncf %0 : vector<2x16xf32> to vector<2x16xbf16>
    %2 = arith.extf %1 : vector<2x16xbf16> to vector<2x16xf32>
    %3 = arith.subf %0, %2 : vector<2x16xf32>
    %4 = arith.truncf %3 : vector<2x16xf32> to vector<2x16xbf16>
    %c0_1 = arith.constant 0 : index
    %c0_2 = arith.constant 0 : index
    %5 = vector.load %arg7[%c0_1, %c0_2] : memref<8x128xf32, #tpu.memory_space<vmem>>, vector<1x128xf32>
    %c1 = arith.constant 1 : index
    %c0_3 = arith.constant 0 : index
    %6 = vector.load %arg7[%c1, %c0_3] : memref<8x128xf32, #tpu.memory_space<vmem>>, vector<1x128xf32>
    %c2 = arith.constant 2 : index
    %c0_4 = arith.constant 0 : index
    %7 = vector.load %arg7[%c2, %c0_4] : memref<8x128xf32, #tpu.memory_space<vmem>>, vector<1x128xf32>
    %c3 = arith.constant 3 : index
    %c0_5 = arith.constant 0 : index
    %8 = vector.load %arg7[%c3, %c0_5] : memref<8x128xf32, #tpu.memory_space<vmem>>, vector<1x128xf32>
    %c4 = arith.constant 4 : index
    %c0_6 = arith.constant 0 : index
    %9 = vector.load %arg7[%c4, %c0_6] : memref<8x128xf32, #tpu.memory_space<vmem>>, vector<1x128xf32>
    %c5 = arith.constant 5 : index
    %c0_7 = arith.constant 0 : index
    %10 = vector.load %arg7[%c5, %c0_7] : memref<8x128xf32, #tpu.memory_space<vmem>>, vector<1x128xf32>
    %c6 = arith.constant 6 : index
    %c0_8 = arith.constant 0 : index
    %11 = vector.load %arg7[%c6, %c0_8] : memref<8x128xf32, #tpu.memory_space<vmem>>, vector<1x128xf32>
    %c0_9 = arith.constant 0 : index
    %c0_10 = arith.constant 0 : index
    %12 = vector.load %arg2[%c0_9, %c0_10] : memref<16x128xbf16, #tpu.memory_space<vmem>>, vector<16x128xbf16>
    %cst = arith.constant dense<0.000000e+00> : vector<2x128xf32>
    %13 = tpu.matmul %1, %12, %cst {dimension_numbers = #tpu.dot_dimension_numbers<[1], [0], [0], [1], [0, 0, 1, 1], [], []>} : vector<2x16xbf16>, vector<16x128xbf16>, vector<2x128xf32> -> vector<2x128xf32>
    %14 = vector.broadcast %5 : vector<1x128xf32> to vector<2x128xf32>
    %15 = arith.addf %13, %14 : vector<2x128xf32>
    %cst_11 = arith.constant 0.000000e+00 : f32
    %16 = vector.broadcast %cst_11 : f32 to vector<2x128xf32>
    %17 = arith.maximumf %15, %16 : vector<2x128xf32>
    %18 = arith.truncf %17 : vector<2x128xf32> to vector<2x128xbf16>
    %c0_12 = arith.constant 0 : index
    %c0_13 = arith.constant 0 : index
    %19 = vector.load %arg3[%c0_12, %c0_13] : memref<128x128xbf16, #tpu.memory_space<vmem>>, vector<128x128xbf16>
    %cst_14 = arith.constant dense<0.000000e+00> : vector<2x128xf32>
    %20 = tpu.matmul %18, %19, %cst_14 {dimension_numbers = #tpu.dot_dimension_numbers<[1], [0], [0], [1], [0, 0, 1, 1], [], []>} : vector<2x128xbf16>, vector<128x128xbf16>, vector<2x128xf32> -> vector<2x128xf32>
    %21 = vector.broadcast %6 : vector<1x128xf32> to vector<2x128xf32>
    %22 = arith.addf %20, %21 : vector<2x128xf32>
    %cst_15 = arith.constant 0.000000e+00 : f32
    %23 = vector.broadcast %cst_15 : f32 to vector<2x128xf32>
    %24 = arith.maximumf %22, %23 : vector<2x128xf32>
    %25 = arith.truncf %24 : vector<2x128xf32> to vector<2x128xbf16>
    %c0_16 = arith.constant 0 : index
    %c0_17 = arith.constant 0 : index
    %26 = vector.load %arg4[%c0_16, %c0_17] : memref<128x128xbf16, #tpu.memory_space<vmem>>, vector<128x128xbf16>
    %cst_18 = arith.constant dense<0.000000e+00> : vector<2x128xf32>
    %27 = tpu.matmul %25, %26, %cst_18 {dimension_numbers = #tpu.dot_dimension_numbers<[1], [0], [0], [1], [0, 0, 1, 1], [], []>} : vector<2x128xbf16>, vector<128x128xbf16>, vector<2x128xf32> -> vector<2x128xf32>
    %28 = vector.broadcast %7 : vector<1x128xf32> to vector<2x128xf32>
    %29 = arith.addf %27, %28 : vector<2x128xf32>
    %30 = math.tanh %29 : vector<2x128xf32>
    %31 = arith.truncf %30 : vector<2x128xf32> to vector<2x128xbf16>
    %c0_19 = arith.constant 0 : index
    %c0_20 = arith.constant 0 : index
    %32 = vector.load %arg5[%c0_19, %c0_20] : memref<128x128xbf16, #tpu.memory_space<vmem>>, vector<128x128xbf16>
    %cst_21 = arith.constant dense<0.000000e+00> : vector<2x128xf32>
    %33 = tpu.matmul %31, %32, %cst_21 {dimension_numbers = #tpu.dot_dimension_numbers<[1], [0], [0], [1], [0, 0, 1, 1], [], []>} : vector<2x128xbf16>, vector<128x128xbf16>, vector<2x128xf32> -> vector<2x128xf32>
    %34 = vector.broadcast %8 : vector<1x128xf32> to vector<2x128xf32>
    %35 = arith.addf %33, %34 : vector<2x128xf32>
    %c0_22 = arith.constant 0 : index
    %c0_23 = arith.constant 0 : index
    %36 = vector.load %arg6[%c0_22, %c0_23] : memref<16x128xbf16, #tpu.memory_space<vmem>>, vector<16x128xbf16>
    %cst_24 = arith.constant dense<0.000000e+00> : vector<2x128xf32>
    %37 = tpu.matmul %1, %36, %cst_24 {dimension_numbers = #tpu.dot_dimension_numbers<[1], [0], [0], [1], [0, 0, 1, 1], [], []>} : vector<2x16xbf16>, vector<16x128xbf16>, vector<2x128xf32> -> vector<2x128xf32>
    %cst_25 = arith.constant dense<0.000000e+00> : vector<2x128xf32>
    %38 = tpu.matmul %4, %36, %cst_25 {dimension_numbers = #tpu.dot_dimension_numbers<[1], [0], [0], [1], [0, 0, 1, 1], [], []>} : vector<2x16xbf16>, vector<16x128xbf16>, vector<2x128xf32> -> vector<2x128xf32>
    %39 = arith.addf %37, %38 : vector<2x128xf32>
    %40 = vector.broadcast %11 : vector<1x128xf32> to vector<2x128xf32>
    %41 = arith.mulf %39, %40 : vector<2x128xf32>
    %42 = vector.broadcast %9 : vector<1x128xf32> to vector<2x128xf32>
    %43 = arith.subf %42, %41 : vector<2x128xf32>
    %44 = vector.broadcast %10 : vector<1x128xf32> to vector<2x128xf32>
    %45 = arith.subf %44, %41 : vector<2x128xf32>
    %46 = arith.maximumf %35, %43 : vector<2x128xf32>
    %47 = arith.minimumf %46, %45 : vector<2x128xf32>
    %c0_26 = arith.constant 0 : index
    %c0_27 = arith.constant 0 : index
    %48 = vector.load %arg8[%c0_26, %c0_27] : memref<2x128xf32, #tpu.memory_space<vmem>>, vector<2x128xf32>
    tpu.vector_store %arg8[%c0_26, %c0_27], %47 {strides = array<i32>} : memref<2x128xf32, #tpu.memory_space<vmem>>, vector<2x128xf32>,
    return
  }
  func.func @transform_0(%arg0: i32) -> (i32, i32) {
    %c0_i32 = arith.constant 0 : i32
    %c0_i32_0 = arith.constant 0 : i32
    return %arg0, %c0_i32 : i32, i32
  }
  func.func @transform_1(%arg0: i32) -> (i32, i32) {
    %c0_i32 = arith.constant 0 : i32
    %c0_i32_0 = arith.constant 0 : i32
    %c0_i32_1 = arith.constant 0 : i32
    return %c0_i32, %c0_i32_0 : i32, i32
  }
  func.func @transform_2(%arg0: i32) -> (i32, i32) {
    %c0_i32 = arith.constant 0 : i32
    %c0_i32_0 = arith.constant 0 : i32
    %c0_i32_1 = arith.constant 0 : i32
    return %c0_i32, %c0_i32_0 : i32, i32
  }
  func.func @transform_3(%arg0: i32) -> (i32, i32) {
    %c0_i32 = arith.constant 0 : i32
    %c0_i32_0 = arith.constant 0 : i32
    %c0_i32_1 = arith.constant 0 : i32
    return %c0_i32, %c0_i32_0 : i32, i32
  }
  func.func @transform_4(%arg0: i32) -> (i32, i32) {
    %c0_i32 = arith.constant 0 : i32
    %c0_i32_0 = arith.constant 0 : i32
    %c0_i32_1 = arith.constant 0 : i32
    return %c0_i32, %c0_i32_0 : i32, i32
  }
  func.func @transform_5(%arg0: i32) -> (i32, i32) {
    %c0_i32 = arith.constant 0 : i32
    %c0_i32_0 = arith.constant 0 : i32
    %c0_i32_1 = arith.constant 0 : i32
    return %c0_i32, %c0_i32_0 : i32, i32
  }
  func.func @transform_6(%arg0: i32) -> (i32, i32) {
    %c0_i32 = arith.constant 0 : i32
    %c0_i32_0 = arith.constant 0 : i32
    %c0_i32_1 = arith.constant 0 : i32
    return %c0_i32, %c0_i32_0 : i32, i32
  }
  func.func @transform_7(%arg0: i32) -> (i32, i32) {
    %c0_i32 = arith.constant 0 : i32
    %c0_i32_0 = arith.constant 0 : i32
    return %arg0, %c0_i32 : i32, i32
  }
}

</mosaic_0001>

<llo_original>
// kernel: policy_net_forward.1
$region0: #{policy_net_forward.1}
  #allocation0 [shape = 'u32[]', space=smem, size = 0x4, offset = 0x4, fixed_abs, tag = 'smem constant byte address 0x4 - core index']
  #allocation1 [shape = 'u32[144,128]{1,0:T(1,128)}', space=vmem, size = 0x12000, scoped, tag = 'internal scratch']
  %s0 = inlined_call_operand.hbm [shape: f32[2,16], index: 0, kind: input, shape index: {}]
  %s1 = inlined_call_operand.hbm [shape: bf16[16,128], index: 1, kind: input, shape index: {}]
  %s2 = inlined_call_operand.hbm [shape: bf16[128,128], index: 2, kind: input, shape index: {}]
  %s3 = inlined_call_operand.hbm [shape: bf16[128,128], index: 3, kind: input, shape index: {}]
  %s4 = inlined_call_operand.hbm [shape: bf16[128,128], index: 4, kind: input, shape index: {}]
  %s5 = inlined_call_operand.vmem [shape: bf16[16,128], index: 5, kind: input, shape index: {}]
  %s6 = inlined_call_operand.vmem [shape: f32[8,128], index: 6, kind: input, shape index: {}]
  %s7 = inlined_call_operand.hbm [shape: f32[2,128], index: 7, kind: output, shape index: {}]
  %s8 = sld [smem:[#allocation0]]
  $region58: #{policy_net_forward.1} parent=0
    _
  %s10 = ssub.s32 1, %s8
  %s11 = scalar_select 0, %s10, %s8
  $region1: #{policy_net_forward.1} parent=0
    #allocation2 [shape = 'u8[1024]{0}', space=vmem, size = 0x400, scoped, tag = 'input window, operand 0, single buffered']
    #allocation3 [shape = 's32[1]{0}', space=sflag, size = 0x4, scoped, tag = 'scoped memory for policy_net_forward.1']
    #allocation4 [shape = 's32[1]{0}', space=sflag, size = 0x4, scoped, tag = 'scoped memory for policy_net_forward.1']
    #allocation5 [shape = 'u8[4096]{0}', space=vmem, size = 0x1000, scoped, tag = 'input window, operand 1, single buffered']
    #allocation6 [shape = 's32[1]{0}', space=sflag, size = 0x4, scoped, tag = 'scoped memory for policy_net_forward.1']
    #allocation7 [shape = 'u8[32768]{0}', space=vmem, size = 0x8000, scoped, tag = 'input window, operand 2, single buffered']
    #allocation8 [shape = 'u8[32768]{0}', space=vmem, size = 0x8000, scoped, tag = 'input window, operand 3, single buffered']
    #allocation9 [shape = 's32[1]{0}', space=sflag, size = 0x4, scoped, tag = 'scoped memory for policy_net_forward.1']
    #allocation10 [shape = 'u8[32768]{0}', space=vmem, size = 0x8000, scoped, tag = 'input window, operand 4, single buffered']
    #allocation11 [shape = 'u8[1024]{0}', space=vmem, size = 0x400, scoped, tag = 'output window, operand 0, single buffered']
    %12 = vsyncpa [#allocation3], 0
    %13 = vsyncpa [#allocation6], 0
    %14 = vsyncpa [#allocation9], 0
    %15 = vsyncpa [#allocation4], 0
    // Predicated region
    $region2: #{policy_net_forward.1} parent=1 // pred_check
      _
    $region3: #{policy_net_forward.1} parent=1 // pred_check_branch
      %17 = sbr.rel (0) target = $region5
    $region4: #{policy_net_forward.1} parent=1 // pred_region
      %s19 = ssub.s32 32, 32
      %20 = vsyncadd [#allocation3], %s19
      %s22 = sshll.u32 [#allocation2], 4
      %s23 = int_to_ptr.vmem [resolvable:$true] %s22
      %25 = dma.hbm_to_vmem [thread:$0]  %s0, 32, %s23, [#allocation3]
    $region5: #{policy_net_forward.1} parent=1 // pred_fallthru
      _
    // Predicated region
    $region6: #{policy_net_forward.1} parent=1 // pred_check
      _
    $region7: #{policy_net_forward.1} parent=1 // pred_check_branch
      %27 = sbr.rel (0) target = $region9
    $region8: #{policy_net_forward.1} parent=1 // pred_region
      %s29 = ssub.s32 128, 128
      %30 = vsyncadd [#allocation6], %s29
      %s31 = sshll.u32 [#allocation5], 4
      %s32 = int_to_ptr.vmem [resolvable:$true] %s31
      %37 = dma.hbm_to_vmem [thread:$0]  %s1, 128, %s32, [#allocation6], 64, 64, 4
    $region9: #{policy_net_forward.1} parent=1 // pred_fallthru
      _
    // Predicated region
    $region10: #{policy_net_forward.1} parent=1 // pred_check
      _
    $region11: #{policy_net_forward.1} parent=1 // pred_check_branch
      %39 = sbr.rel (0) target = $region13
    $region12: #{policy_net_forward.1} parent=1 // pred_region
      %s41 = ssub.s32 1024, 1024
      %42 = vsyncadd [#allocation6], %s41
      %s43 = sshll.u32 [#allocation7], 4
      %s44 = int_to_ptr.vmem [resolvable:$true] %s43
      %49 = dma.hbm_to_vmem [thread:$0]  %s2, 1024, %s44, [#allocation6], 64, 64, 4
    $region13: #{policy_net_forward.1} parent=1 // pred_fallthru
      _
    // Predicated region
    $region14: #{policy_net_forward.1} parent=1 // pred_check
      _
    $region15: #{policy_net_forward.1} parent=1 // pred_check_branch
      %51 = sbr.rel (0) target = $region17
    $region16: #{policy_net_forward.1} parent=1 // pred_region
      %s53 = ssub.s32 1024, 1024
      %54 = vsyncadd [#allocation9], %s53
      %s55 = sshll.u32 [#allocation8], 4
      %s56 = int_to_ptr.vmem [resolvable:$true] %s55
      %61 = dma.hbm_to_vmem [thread:$0]  %s3, 1024, %s56, [#allocation9], 64, 64, 4
    $region17: #{policy_net_forward.1} parent=1 // pred_fallthru
      _
    // Predicated region
    $region18: #{policy_net_forward.1} parent=1 // pred_check
      _
    $region19: #{policy_net_forward.1} parent=1 // pred_check_branch
      %63 = sbr.rel (0) target = $region21
    $region20: #{policy_net_forward.1} parent=1 // pred_region
      %s65 = ssub.s32 1024, 1024
      %66 = vsyncadd [#allocation9], %s65
      %s67 = sshll.u32 [#allocation10], 4
      %s68 = int_to_ptr.vmem [resolvable:$true] %s67
      %73 = dma.hbm_to_vmem [thread:$0]  %s4, 1024, %s68, [#allocation9], 64, 64, 4
    $region21: #{policy_net_forward.1} parent=1 // pred_fallthru
      _
    // Predicated region
    $region22: #{policy_net_forward.1} parent=1 // pred_check
      _
    $region23: #{policy_net_forward.1} parent=1 // pred_check_branch
      %75 = sbr.rel (0) target = $region25
    $region24: #{policy_net_forward.1} parent=1 // pred_region
      _
    $region25: #{policy_net_forward.1} parent=1 // pred_fallthru
      _
    // Predicated region
    $region26: #{policy_net_forward.1} parent=1 // pred_check
      _
    $region27: #{policy_net_forward.1} parent=1 // pred_check_branch
      %77 = sbr.rel (0) target = $region29
    $region28: #{policy_net_forward.1} parent=1 // pred_region
      _
    $region29: #{policy_net_forward.1} parent=1 // pred_fallthru
      _
    // Predicated region
    $region30: #{policy_net_forward.1} parent=1 // pred_check
      _
    $region31: #{policy_net_forward.1} parent=1 // pred_check_branch
      %79 = sbr.rel (0) target = $region33
    $region32: #{policy_net_forward.1} parent=1 // pred_region
      %80 = dma.done [#allocation3], 32
    $region33: #{policy_net_forward.1} parent=1 // pred_fallthru
      _
    // Predicated region
    $region34: #{policy_net_forward.1} parent=1 // pred_check
      _
    $region35: #{policy_net_forward.1} parent=1 // pred_check_branch
      %82 = sbr.rel (0) target = $region37
    $region36: #{policy_net_forward.1} parent=1 // pred_region
      %83 = dma.done [#allocation6], 128
    $region37: #{policy_net_forward.1} parent=1 // pred_fallthru
      _
    // Predicated region
    $region38: #{policy_net_forward.1} parent=1 // pred_check
      _
    $region39: #{policy_net_forward.1} parent=1 // pred_check_branch
      %85 = sbr.rel (0) target = $region41
    $region40: #{policy_net_forward.1} parent=1 // pred_region
      %86 = dma.done [#allocation6], 1024
    $region41: #{policy_net_forward.1} parent=1 // pred_fallthru
      _
    // Predicated region
    $region42: #{policy_net_forward.1} parent=1 // pred_check
      _
    $region43: #{policy_net_forward.1} parent=1 // pred_check_branch
      %88 = sbr.rel (0) target = $region45
    $region44: #{policy_net_forward.1} parent=1 // pred_region
      %89 = dma.done [#allocation9], 1024
    $region45: #{policy_net_forward.1} parent=1 // pred_fallthru
      _
    // Predicated region
    $region46: #{policy_net_forward.1} parent=1 // pred_check
      _
    $region47: #{policy_net_forward.1} parent=1 // pred_check_branch
      %91 = sbr.rel (0) target = $region49
    $region48: #{policy_net_forward.1} parent=1 // pred_region
      %92 = dma.done [#allocation9], 1024
    $region49: #{policy_net_forward.1} parent=1 // pred_fallthru
      _
    %v94 = vld [vmem:[#allocation2] sm:$0x3]
    %v95 = vpack.c.bf16 %v94, %v94
    %v96 = vunpack.c.l.bf16 %v95
    %v97 = vsub.f32 %v94, %v96
    %v98 = vpack.c.bf16 %v97, %v97
    %v99 = vld [vmem:[%s6] sm:$0x1]
    %v100 = vld [vmem:[%s6 + $0x1] sm:$0x1]
    %v101 = vld [vmem:[%s6 + $0x2] sm:$0x1]
    %v102 = vld [vmem:[%s6 + $0x3] sm:$0x1]
    %v103 = vld [vmem:[%s6 + $0x4] sm:$0x1]
    %v104 = vld [vmem:[%s6 + $0x5] sm:$0x1]
    %v105 = vld [vmem:[%s6 + $0x6] sm:$0x1]
    %v106 = vld [vmem:[#allocation5] sm:$0xf]
    %v107 = vld [vmem:[#allocation5 + $0x4] sm:$0xf]
    %v108 = vlaneseq
    %v109 = vshrl.u32 %v108, 7
    %v110 = vsub.s32 0, %v109
    %v111 = vrot.slane %v99, %v110
    %v114 = vunpack.c.l.b16 %v106
    %v115 = vunpack.c.l.b16 %v107
    %v116 = vpack.c.b16 %v115, %v114
    %vm118 = vcmask 130048
    %v120 = vsel %vm118, %v95, 0
    %122 = vmatprep.subr.bf16.mxu0 0
    %123 = vmatpush1.bf16.msra.mxu0 %v116
    %124 = vmatprep.subr.bf16.mxu0 0
    %125 = vmatpush1.bf16.msra.mxu0 0
    %126 = vmatprep.subr.bf16.mxu0 0
    %127 = vmatpush1.bf16.msra.mxu0 0
    %128 = vmatprep.subr.bf16.mxu0 0
    %129 = vmatpush1.bf16.msra.mxu0 0
    %130 = vmatprep.subr.bf16.mxu0 0
    %131 = vmatpush1.bf16.msra.mxu0 0
    %132 = vmatprep.subr.bf16.mxu0 0
    %133 = vmatpush1.bf16.msra.mxu0 0
    %134 = vmatprep.subr.bf16.mxu0 0
    %135 = vmatpush1.bf16.msra.mxu0 0
    %136 = vmatprep.subr.bf16.mxu0 0
    %137 = vmatpush1.bf16.msra.mxu0 0
    %138 = vmatprep.subr.bf16.mxu0 0
    %139 = vmatpush1.bf16.msra.mxu0 0
    %140 = vmatprep.subr.bf16.mxu0 0
    %141 = vmatpush1.bf16.msra.mxu0 0
    %142 = vmatprep.subr.bf16.mxu0 0
    %143 = vmatpush1.bf16.msra.mxu0 0
    %144 = vmatprep.subr.bf16.mxu0 0
    %145 = vmatpush1.bf16.msra.mxu0 0
    %146 = vmatprep.subr.bf16.mxu0 0
    %147 = vmatpush1.bf16.msra.mxu0 0
    %148 = vmatprep.subr.bf16.mxu0 0
    %149 = vmatpush1.bf16.msra.mxu0 0
    %150 = vmatprep.subr.bf16.mxu0 0
    %151 = vmatpush1.bf16.msra.mxu0 0
    %152 = vmatprep.subr.bf16.mxu0 0
    %153 = vmatpush1.bf16.msra.mxu0 0
    %154 = vmatprep.mubr.bf16.mxu0 0
    %155 = vmatmul.mubr.bf16.gmra.mrb[0].mxu0 %v120
    %v156 = vpop.f32.mrb[0].mxu0
    %v157 = vadd.f32 %v111, %v156
    %v158 = vpop.f32.mrb[0].mxu0
    %v159 = vpop.f32.mrb[0].mxu0
    %v160 = vpop.f32.mrb[0].mxu0
    %161 = vdwg.mxu0
    %v162 = vmax.f32 %v157, 0.0
    %v163 = vpack.c.bf16 %v162, %v162
    %v164 = vld [vmem:[#allocation7] sm:$0xf]
    %v165 = vld [vmem:[#allocation7 + $0x4] sm:$0xf]
    %v166 = vld [vmem:[#allocation7 + $0x8] sm:$0xf]
    %v167 = vld [vmem:[#allocation7 + $0xc] sm:$0xf]
    %v168 = vld [vmem:[#allocation7 + $0x10] sm:$0xf]
    %v169 = vld [vmem:[#allocation7 + $0x14] sm:$0xf]
    %v170 = vld [vmem:[#allocation7 + $0x18] sm:$0xf]
    %v171 = vld [vmem:[#allocation7 + $0x1c] sm:$0xf]
    %v172 = vld [vmem:[#allocation7 + $0x20] sm:$0xf]
    %v173 = vld [vmem:[#allocation7 + $0x24] sm:$0xf]
    %v174 = vld [vmem:[#allocation7 + $0x28] sm:$0xf]
    %v175 = vld [vmem:[#allocation7 + $0x2c] sm:$0xf]
    %v176 = vld [vmem:[#allocation7 + $0x30] sm:$0xf]
    %v177 = vld [vmem:[#allocation7 + $0x34] sm:$0xf]
    %v178 = vld [vmem:[#allocation7 + $0x38] sm:$0xf]
    %v179 = vld [vmem:[#allocation7 + $0x3c] sm:$0xf]
    %v180 = vlaneseq
    %v181 = vshrl.u32 %v180, 7
    %v182 = vsub.s32 0, %v181
    %v183 = vrot.slane %v100, %v182
    %v200 = vunpack.c.l.b16 %v164
    %v201 = vunpack.c.l.b16 %v165
    %v202 = vunpack.c.l.b16 %v166
    %v203 = vunpack.c.l.b16 %v167
    %v204 = vunpack.c.l.b16 %v168
    %v205 = vunpack.c.l.b16 %v169
    %v206 = vunpack.c.l.b16 %v170
    %v207 = vunpack.c.l.b16 %v171
    %v208 = vunpack.c.l.b16 %v172
    %v209 = vunpack.c.l.b16 %v173
    %v210 = vunpack.c.l.b16 %v174
    %v211 = vunpack.c.l.b16 %v175
    %v212 = vunpack.c.l.b16 %v176
    %v213 = vunpack.c.l.b16 %v177
    %v214 = vunpack.c.l.b16 %v178
    %v215 = vunpack.c.l.b16 %v179
    %v216 = vpack.c.b16 %v201, %v200
    %v217 = vpack.c.b16 %v203, %v202
    %v218 = vpack.c.b16 %v205, %v204
    %v219 = vpack.c.b16 %v207, %v206
    %v220 = vpack.c.b16 %v209, %v208
    %v221 = vpack.c.b16 %v211, %v210
    %v222 = vpack.c.b16 %v213, %v212
    %v223 = vpack.c.b16 %v215, %v214
    %232 = vmatprep.subr.bf16.mxu0 0
    %233 = vmatpush1.bf16.msra.mxu0 %v216
    %234 = vmatprep.subr.bf16.mxu0 0
    %235 = vmatpush1.bf16.msra.mxu0 %v217
    %236 = vmatprep.subr.bf16.mxu0 0
    %237 = vmatpush1.bf16.msra.mxu0 %v218
    %238 = vmatprep.subr.bf16.mxu0 0
    %239 = vmatpush1.bf16.msra.mxu0 %v219
    %240 = vmatprep.subr.bf16.mxu0 0
    %241 = vmatpush1.bf16.msra.mxu0 %v220
    %242 = vmatprep.subr.bf16.mxu0 0
    %243 = vmatpush1.bf16.msra.mxu0 %v221
    %244 = vmatprep.subr.bf16.mxu0 0
    %245 = vmatpush1.bf16.msra.mxu0 %v222
    %246 = vmatprep.subr.bf16.mxu0 0
    %247 = vmatpush1.bf16.msra.mxu0 %v223
    %248 = vmatprep.subr.bf16.mxu0 0
    %249 = vmatpush1.bf16.msra.mxu0 0
    %250 = vmatprep.subr.bf16.mxu0 0
    %251 = vmatpush1.bf16.msra.mxu0 0
    %252 = vmatprep.subr.bf16.mxu0 0
    %253 = vmatpush1.bf16.msra.mxu0 0
    %254 = vmatprep.subr.bf16.mxu0 0
    %255 = vmatpush1.bf16.msra.mxu0 0
    %256 = vmatprep.subr.bf16.mxu0 0
    %257 = vmatpush1.bf16.msra.mxu0 0
    %258 = vmatprep.subr.bf16.mxu0 0
    %259 = vmatpush1.bf16.msra.mxu0 0
    %260 = vmatprep.subr.bf16.mxu0 0
    %261 = vmatpush1.bf16.msra.mxu0 0
    %262 = vmatprep.subr.bf16.mxu0 0
    %263 = vmatpush1.bf16.msra.mxu0 0
    %264 = vmatprep.mubr.bf16.mxu0 0
    %265 = vmatmul.mubr.bf16.gmra.mrb[0].mxu0 %v163
    %v266 = vpop.f32.mrb[0].mxu0
    %v267 = vadd.f32 %v183, %v266
    %v268 = vpop.f32.mrb[0].mxu0
    %v269 = vpop.f32.mrb[0].mxu0
    %v270 = vpop.f32.mrb[0].mxu0
    %271 = vdwg.mxu0
    %v272 = vmax.f32 %v267, 0.0
    %v273 = vpack.c.bf16 %v272, %v272
    %v274 = vld [vmem:[#allocation8] sm:$0xf]
    %v275 = vld [vmem:[#allocation8 + $0x4] sm:$0xf]
    %v276 = vld [vmem:[#allocation8 + $0x8] sm:$0xf]
    %v277 = vld [vmem:[#allocation8 + $0xc] sm:$0xf]
    %v278 = vld [vmem:[#allocation8 + $0x10] sm:$0xf]
    %v279 = vld [vmem:[#allocation8 + $0x14] sm:$0xf]
    %v280 = vld [vmem:[#allocation8 + $0x18] sm:$0xf]
    %v281 = vld [vmem:[#allocation8 + $0x1c] sm:$0xf]
    %v282 = vld [vmem:[#allocation8 + $0x20] sm:$0xf]
    %v283 = vld [vmem:[#allocation8 + $0x24] sm:$0xf]
    %v284 = vld [vmem:[#allocation8 + $0x28] sm:$0xf]
    %v285 = vld [vmem:[#allocation8 + $0x2c] sm:$0xf]
    %v286 = vld [vmem:[#allocation8 + $0x30] sm:$0xf]
    %v287 = vld [vmem:[#allocation8 + $0x34] sm:$0xf]
    %v288 = vld [vmem:[#allocation8 + $0x38] sm:$0xf]
    %v289 = vld [vmem:[#allocation8 + $0x3c] sm:$0xf]
    %v290 = vlaneseq
    %v291 = vshrl.u32 %v290, 7
    %v292 = vsub.s32 0, %v291
    %v293 = vrot.slane %v101, %v292
    %v310 = vunpack.c.l.b16 %v274
    %v311 = vunpack.c.l.b16 %v275
    %v312 = vunpack.c.l.b16 %v276
    %v313 = vunpack.c.l.b16 %v277
    %v314 = vunpack.c.l.b16 %v278
    %v315 = vunpack.c.l.b16 %v279
    %v316 = vunpack.c.l.b16 %v280
    %v317 = vunpack.c.l.b16 %v281
    %v318 = vunpack.c.l.b16 %v282
    %v319 = vunpack.c.l.b16 %v283
    %v320 = vunpack.c.l.b16 %v284
    %v321 = vunpack.c.l.b16 %v285
    %v322 = vunpack.c.l.b16 %v286
    %v323 = vunpack.c.l.b16 %v287
    %v324 = vunpack.c.l.b16 %v288
    %v325 = vunpack.c.l.b16 %v289
    %v326 = vpack.c.b16 %v311, %v310
    %v327 = vpack.c.b16 %v313, %v312
    %v328 = vpack.c.b16 %v315, %v314
    %v329 = vpack.c.b16 %v317, %v316
    %v330 = vpack.c.b16 %v319, %v318
    %v331 = vpack.c.b16 %v321, %v320
    %v332 = vpack.c.b16 %v323, %v322
    %v333 = vpack.c.b16 %v325, %v324
    %342 = vmatprep.subr.bf16.mxu0 0
    %343 = vmatpush1.bf16.msra.mxu0 %v326
    %344 = vmatprep.subr.bf16.mxu0 0
    %345 = vmatpush1.bf16.msra.mxu0 %v327
    %346 = vmatprep.subr.bf16.mxu0 0
    %347 = vmatpush1.bf16.msra.mxu0 %v328
    %348 = vmatprep.subr.bf16.mxu0 0
    %349 = vmatpush1.bf16.msra.mxu0 %v329
    %350 = vmatprep.subr.bf16.mxu0 0
    %351 = vmatpush1.bf16.msra.mxu0 %v330
    %352 = vmatprep.subr.bf16.mxu0 0
    %353 = vmatpush1.bf16.msra.mxu0 %v331
    %354 = vmatprep.subr.bf16.mxu0 0
    %355 = vmatpush1.bf16.msra.mxu0 %v332
    %356 = vmatprep.subr.bf16.mxu0 0
    %357 = vmatpush1.bf16.msra.mxu0 %v333
    %358 = vmatprep.subr.bf16.mxu0 0
    %359 = vmatpush1.bf16.msra.mxu0 0
    %360 = vmatprep.subr.bf16.mxu0 0
    %361 = vmatpush1.bf16.msra.mxu0 0
    %362 = vmatprep.subr.bf16.mxu0 0
    %363 = vmatpush1.bf16.msra.mxu0 0
    %364 = vmatprep.subr.bf16.mxu0 0
    %365 = vmatpush1.bf16.msra.mxu0 0
    %366 = vmatprep.subr.bf16.mxu0 0
    %367 = vmatpush1.bf16.msra.mxu0 0
    %368 = vmatprep.subr.bf16.mxu0 0
    %369 = vmatpush1.bf16.msra.mxu0 0
    %370 = vmatprep.subr.bf16.mxu0 0
    %371 = vmatpush1.bf16.msra.mxu0 0
    %372 = vmatprep.subr.bf16.mxu0 0
    %373 = vmatpush1.bf16.msra.mxu0 0
    %374 = vmatprep.mubr.bf16.mxu0 0
    %375 = vmatmul.mubr.bf16.gmra.mrb[0].mxu0 %v273
    %v376 = vpop.f32.mrb[0].mxu0
    %v377 = vadd.f32 %v293, %v376
    %v378 = vpop.f32.mrb[0].mxu0
    %v379 = vpop.f32.mrb[0].mxu0
    %v380 = vpop.f32.mrb[0].mxu0
    %381 = vdwg.mxu0
    %v382 = vtanh.pop %v377
    %v383 = vpack.c.bf16 %v382, %v382
    %v384 = vld [vmem:[#allocation10] sm:$0xf]
    %v385 = vld [vmem:[#allocation10 + $0x4] sm:$0xf]
    %v386 = vld [vmem:[#allocation10 + $0x8] sm:$0xf]
    %v387 = vld [vmem:[#allocation10 + $0xc] sm:$0xf]
    %v388 = vld [vmem:[#allocation10 + $0x10] sm:$0xf]
    %v389 = vld [vmem:[#allocation10 + $0x14] sm:$0xf]
    %v390 = vld [vmem:[#allocation10 + $0x18] sm:$0xf]
    %v391 = vld [vmem:[#allocation10 + $0x1c] sm:$0xf]
    %v392 = vld [vmem:[#allocation10 + $0x20] sm:$0xf]
    %v393 = vld [vmem:[#allocation10 + $0x24] sm:$0xf]
    %v394 = vld [vmem:[#allocation10 + $0x28] sm:$0xf]
    %v395 = vld [vmem:[#allocation10 + $0x2c] sm:$0xf]
    %v396 = vld [vmem:[#allocation10 + $0x30] sm:$0xf]
    %v397 = vld [vmem:[#allocation10 + $0x34] sm:$0xf]
    %v398 = vld [vmem:[#allocation10 + $0x38] sm:$0xf]
    %v399 = vld [vmem:[#allocation10 + $0x3c] sm:$0xf]
    %v400 = vlaneseq
    %v401 = vshrl.u32 %v400, 7
    %v402 = vsub.s32 0, %v401
    %v403 = vrot.slane %v102, %v402
    %v420 = vunpack.c.l.b16 %v384
    %v421 = vunpack.c.l.b16 %v385
    %v422 = vunpack.c.l.b16 %v386
    %v423 = vunpack.c.l.b16 %v387
    %v424 = vunpack.c.l.b16 %v388
    %v425 = vunpack.c.l.b16 %v389
    %v426 = vunpack.c.l.b16 %v390
    %v427 = vunpack.c.l.b16 %v391
    %v428 = vunpack.c.l.b16 %v392
    %v429 = vunpack.c.l.b16 %v393
    %v430 = vunpack.c.l.b16 %v394
    %v431 = vunpack.c.l.b16 %v395
    %v432 = vunpack.c.l.b16 %v396
    %v433 = vunpack.c.l.b16 %v397
    %v434 = vunpack.c.l.b16 %v398
    %v435 = vunpack.c.l.b16 %v399
    %v436 = vpack.c.b16 %v421, %v420
    %v437 = vpack.c.b16 %v423, %v422
    %v438 = vpack.c.b16 %v425, %v424
    %v439 = vpack.c.b16 %v427, %v426
    %v440 = vpack.c.b16 %v429, %v428
    %v441 = vpack.c.b16 %v431, %v430
    %v442 = vpack.c.b16 %v433, %v432
    %v443 = vpack.c.b16 %v435, %v434
    %452 = vmatprep.subr.bf16.mxu0 0
    %453 = vmatpush1.bf16.msra.mxu0 %v436
    %454 = vmatprep.subr.bf16.mxu0 0
    %455 = vmatpush1.bf16.msra.mxu0 %v437
    %456 = vmatprep.subr.bf16.mxu0 0
    %457 = vmatpush1.bf16.msra.mxu0 %v438
    %458 = vmatprep.subr.bf16.mxu0 0
    %459 = vmatpush1.bf16.msra.mxu0 %v439
    %460 = vmatprep.subr.bf16.mxu0 0
    %461 = vmatpush1.bf16.msra.mxu0 %v440
    %462 = vmatprep.subr.bf16.mxu0 0
    %463 = vmatpush1.bf16.msra.mxu0 %v441
    %464 = vmatprep.subr.bf16.mxu0 0
    %465 = vmatpush1.bf16.msra.mxu0 %v442
    %466 = vmatprep.subr.bf16.mxu0 0
    %467 = vmatpush1.bf16.msra.mxu0 %v443
    %468 = vmatprep.subr.bf16.mxu0 0
    %469 = vmatpush1.bf16.msra.mxu0 0
    %470 = vmatprep.subr.bf16.mxu0 0
    %471 = vmatpush1.bf16.msra.mxu0 0
    %472 = vmatprep.subr.bf16.mxu0 0
    %473 = vmatpush1.bf16.msra.mxu0 0
    %474 = vmatprep.subr.bf16.mxu0 0
    %475 = vmatpush1.bf16.msra.mxu0 0
    %476 = vmatprep.subr.bf16.mxu0 0
    %477 = vmatpush1.bf16.msra.mxu0 0
    %478 = vmatprep.subr.bf16.mxu0 0
    %479 = vmatpush1.bf16.msra.mxu0 0
    %480 = vmatprep.subr.bf16.mxu0 0
    %481 = vmatpush1.bf16.msra.mxu0 0
    %482 = vmatprep.subr.bf16.mxu0 0
    %483 = vmatpush1.bf16.msra.mxu0 0
    %484 = vmatprep.mubr.bf16.mxu0 0
    %485 = vmatmul.mubr.bf16.gmra.mrb[0].mxu0 %v383
    %v486 = vpop.f32.mrb[0].mxu0
    %v487 = vadd.f32 %v403, %v486
    %v488 = vpop.f32.mrb[0].mxu0
    %v489 = vpop.f32.mrb[0].mxu0
    %v490 = vpop.f32.mrb[0].mxu0
    %491 = vdwg.mxu0
    %v492 = vld [vmem:[%s5] sm:$0xf]
    %v493 = vld [vmem:[%s5 + $0x4] sm:$0xf]
    %v496 = vunpack.c.l.b16 %v492
    %v497 = vunpack.c.l.b16 %v493
    %v498 = vpack.c.b16 %v497, %v496
    %v501 = vsel %vm118, %v98, 0
    %503 = vmatprep.subr.bf16.mxu0 0
    %504 = vmatpush1.bf16.msra.mxu0 %v498
    %505 = vmatprep.subr.bf16.mxu0 0
    %506 = vmatpush1.bf16.msra.mxu0 0
    %507 = vmatprep.subr.bf16.mxu0 0
    %508 = vmatpush1.bf16.msra.mxu0 0
    %509 = vmatprep.subr.bf16.mxu0 0
    %510 = vmatpush1.bf16.msra.mxu0 0
    %511 = vmatprep.subr.bf16.mxu0 0
    %512 = vmatpush1.bf16.msra.mxu0 0
    %513 = vmatprep.subr.bf16.mxu0 0
    %514 = vmatpush1.bf16.msra.mxu0 0
    %515 = vmatprep.subr.bf16.mxu0 0
    %516 = vmatpush1.bf16.msra.mxu0 0
    %517 = vmatprep.subr.bf16.mxu0 0
    %518 = vmatpush1.bf16.msra.mxu0 0
    %519 = vmatprep.subr.bf16.mxu0 0
    %520 = vmatpush1.bf16.msra.mxu0 0
    %521 = vmatprep.subr.bf16.mxu0 0
    %522 = vmatpush1.bf16.msra.mxu0 0
    %523 = vmatprep.subr.bf16.mxu0 0
    %524 = vmatpush1.bf16.msra.mxu0 0
    %525 = vmatprep.subr.bf16.mxu0 0
    %526 = vmatpush1.bf16.msra.mxu0 0
    %527 = vmatprep.subr.bf16.mxu0 0
    %528 = vmatpush1.bf16.msra.mxu0 0
    %529 = vmatprep.subr.bf16.mxu0 0
    %530 = vmatpush1.bf16.msra.mxu0 0
    %531 = vmatprep.subr.bf16.mxu0 0
    %532 = vmatpush1.bf16.msra.mxu0 0
    %533 = vmatprep.subr.bf16.mxu0 0
    %534 = vmatpush1.bf16.msra.mxu0 0
    %535 = vmatprep.mubr.bf16.mxu0 0
    %536 = vmatmul.mubr.bf16.gmra.mrb[0].mxu0 %v501
    %v537 = vpop.f32.mrb[0].mxu0
    %v538 = vadd.f32 0.0, %v537
    %v539 = vpop.f32.mrb[0].mxu0
    %v540 = vpop.f32.mrb[0].mxu0
    %v541 = vpop.f32.mrb[0].mxu0
    %542 = vdwg.mxu0
    %543 = vmatprep.subr.bf16.mxu0 0
    %544 = vmatpush1.bf16.msra.mxu0 %v498
    %545 = vmatprep.subr.bf16.mxu0 0
    %546 = vmatpush1.bf16.msra.mxu0 0
    %547 = vmatprep.subr.bf16.mxu0 0
    %548 = vmatpush1.bf16.msra.mxu0 0
    %549 = vmatprep.subr.bf16.mxu0 0
    %550 = vmatpush1.bf16.msra.mxu0 0
    %551 = vmatprep.subr.bf16.mxu0 0
    %552 = vmatpush1.bf16.msra.mxu0 0
    %553 = vmatprep.subr.bf16.mxu0 0
    %554 = vmatpush1.bf16.msra.mxu0 0
    %555 = vmatprep.subr.bf16.mxu0 0
    %556 = vmatpush1.bf16.msra.mxu0 0
    %557 = vmatprep.subr.bf16.mxu0 0
    %558 = vmatpush1.bf16.msra.mxu0 0
    %559 = vmatprep.subr.bf16.mxu0 0
    %560 = vmatpush1.bf16.msra.mxu0 0
    %561 = vmatprep.subr.bf16.mxu0 0
    %562 = vmatpush1.bf16.msra.mxu0 0
    %563 = vmatprep.subr.bf16.mxu0 0
    %564 = vmatpush1.bf16.msra.mxu0 0
    %565 = vmatprep.subr.bf16.mxu0 0
    %566 = vmatpush1.bf16.msra.mxu0 0
    %567 = vmatprep.subr.bf16.mxu0 0
    %568 = vmatpush1.bf16.msra.mxu0 0
    %569 = vmatprep.subr.bf16.mxu0 0
    %570 = vmatpush1.bf16.msra.mxu0 0
    %571 = vmatprep.subr.bf16.mxu0 0
    %572 = vmatpush1.bf16.msra.mxu0 0
    %573 = vmatprep.subr.bf16.mxu0 0
    %574 = vmatpush1.bf16.msra.mxu0 0
    %575 = vmatprep.mubr.bf16.mxu0 0
    %576 = vmatmul.mubr.bf16.gmra.mrb[0].mxu0 %v120
    %v577 = vpop.f32.mrb[0].mxu0
    %v578 = vadd.f32 %v538, %v577
    %v579 = vpop.f32.mrb[0].mxu0
    %v580 = vpop.f32.mrb[0].mxu0
    %v581 = vpop.f32.mrb[0].mxu0
    %582 = vdwg.mxu0
    %v583 = vlaneseq
    %v584 = vshrl.u32 %v583, 7
    %v585 = vsub.s32 0, %v584
    %v586 = vrot.slane %v105, %v585
    %v587 = vmul.f32 %v578, %v586
    %v588 = vlaneseq
    %v589 = vshrl.u32 %v588, 7
    %v590 = vsub.s32 0, %v589
    %v591 = vrot.slane %v103, %v590
    %v592 = vsub.f32 %v591, %v587
    %v593 = vlaneseq
    %v594 = vshrl.u32 %v593, 7
    %v595 = vsub.s32 0, %v594
    %v596 = vrot.slane %v104, %v595
    %v597 = vsub.f32 %v596, %v587
    %v598 = vmax.f32 %v487, %v592
    %v599 = vmin.f32 %v598, %v597
    %600 = vst [vmem:[#allocation11] sm:$0x3] %v599
    // Predicated region
    $region50: #{policy_net_forward.1} parent=1 // pred_check
      _
    $region51: #{policy_net_forward.1} parent=1 // pred_check_branch
      %602 = sbr.rel (0) target = $region53
    $region52: #{policy_net_forward.1} parent=1 // pred_region
      %s604 = ssub.s32 32, 32
      %605 = vsyncadd [#allocation4], %s604
      %s607 = sshll.u32 [#allocation11], 4
      %s608 = int_to_ptr.vmem [resolvable:$true] %s607
      %610 = dma.vmem_to_hbm [thread:$0]  %s608, 32, %s7, [#allocation4]
    $region53: #{policy_net_forward.1} parent=1 // pred_fallthru
      _
    // Predicated region
    $region54: #{policy_net_forward.1} parent=1 // pred_check
      _
    $region55: #{policy_net_forward.1} parent=1 // pred_check_branch
      %612 = sbr.rel (0) target = $region57
    $region56: #{policy_net_forward.1} parent=1 // pred_region
      %613 = dma.done [#allocation4], 32
    $region57: #{policy_net_forward.1} parent=1 // pred_fallthru
      _
    %614 = vsyncpa [#allocation3], 1
    %615 = vsyncpa [#allocation6], 1
    %616 = vsyncpa [#allocation9], 1
    %617 = vsyncpa [#allocation4], 1

</llo_original>
